<compile_context>
chip_gen: v6e
topology: v6e:2x2x1
jax: 0.10.0
libtpu: 0.0.40
codegen_flags: <defaults>
</compile_context>

<pallas_src>
import jax
import jax.numpy as jnp
from jax.experimental import pallas as pl
from jax.experimental.pallas import tpu as pltpu


def _make_kernel(multiply_in_f32):
    def kernel(g_ref, x_ref, o_ref):
        # g_ref: (TC, 1) gate logits; x_ref: (TC, HW) features.
        gate = jax.nn.sigmoid(g_ref[...].astype(jnp.float32))      # EUP, tiny
        if multiply_in_f32:
            o_ref[...] = (x_ref[...].astype(jnp.float32) * gate).astype(o_ref.dtype)
        else:
            # bf16 path (v6e/v7x): multiply in native dtype; halves vreg
            # pressure and vld/vst traffic. Gate is cast once per tile.
            o_ref[...] = x_ref[...] * gate.astype(x_ref.dtype)
    return kernel


def _device_kind():
    try:
        return jax.devices()[0].device_kind.lower()
    except Exception:
        return ""


def _divisor_candidates(rows, sublane):
    """Block counts nb such that rows % nb == 0 and the channel tile is either
    the full array or a legal sublane multiple for this dtype."""
    cands = []
    for nb in range(1, rows + 1):
        if rows % nb:
            continue
        tc = rows // nb
        if tc == rows or tc % sublane == 0:
            cands.append(nb)
    return cands


def _pick_num_blocks(rows, hw, itemsize, sublane, target_nb, vmem_budget_bytes):
    """Pick the candidate block count closest to `target_nb` whose real VMEM
    footprint (double-buffered in + out feature tiles + lane-padded gate tile,
    also double-buffered) fits the budget.  If nothing fits, pick the largest
    legal block count (smallest tile) rather than an unguarded whole block."""
    hw_pad = -(-hw // 128) * 128          # last dim padded to lanes in VMEM

    def footprint(tc):
        feat = tc * hw_pad * itemsize     # one feature tile (in or out)
        gate = tc * 128 * itemsize        # gate tile padded to 128 lanes
        return 2 * feat + 2 * feat + 2 * gate   # 2x in + 2x out + 2x gate

    cands = _divisor_candidates(rows, sublane)
    fitting = [nb for nb in cands if footprint(rows // nb) <= vmem_budget_bytes]
    if fitting:
        # Closest to target; tie-break toward more blocks (more pipelining).
        return min(fitting, key=lambda nb: (abs(nb - target_nb), -nb))
    return max(cands)


def sigmoid_mul(x495, x491, *, num_blocks=None, vmem_budget_bytes=2 << 20):
    """x495: (N, C, 1, 1) gate logits, x491: (N, C, H, W) -> (N, C, H, W)."""
    n, c, h, w = x491.shape
    assert x495.shape == (n, c, 1, 1), (x495.shape, x491.shape)
    hw = h * w
    rows = n * c                          # fold batch into the channel axis

    x2d = x491.reshape(rows, hw)          # (N*C, HW)  -- contiguous view
    g2d = x495.reshape(rows, 1)           # (N*C, 1)

    kind = _device_kind()
    n_cores = 2 if "v7" in kind else 1    # v7x has 2 TensorCores per chip

    itemsize = jnp.dtype(x491.dtype).itemsize
    sublane = {4: 8, 2: 16, 1: 32}.get(itemsize, 8)

    if num_blocks is None:
        target_nb = 4 * n_cores           # ~2-4 pipelined steps per core
        nb = _pick_num_blocks(rows, hw, itemsize, sublane, target_nb,
                              vmem_budget_bytes)
    else:
        nb = num_blocks
        assert rows % nb == 0, (rows, nb)
    tc = rows // nb

    # f32 inputs always multiply in f32; bf16 multiplies natively except on
    # v5e (no bf16 VALU).
    multiply_in_f32 = (itemsize == 4) or ("v5" in kind)

    out2d = pl.pallas_call(
        _make_kernel(multiply_in_f32),
        out_shape=jax.ShapeDtypeStruct((rows, hw), x491.dtype),
        grid_spec=pl.GridSpec(
            grid=(nb,),
            in_specs=[
                pl.BlockSpec((tc, 1), lambda i: (i, 0)),    # gate tile
                pl.BlockSpec((tc, hw), lambda i: (i, 0)),   # feature tile
            ],
            out_specs=pl.BlockSpec((tc, hw), lambda i: (i, 0)),
        ),
        compiler_params=pltpu.CompilerParams(
            dimension_semantics=("parallel",),
            vmem_limit_bytes=32 * 1024 * 1024,
        ),
    )(g2d, x2d)

    return out2d.reshape(n, c, h, w)


if __name__ == "__main__":
    # Small shapes consistent with the module (original: N=1, C=1344, H=W=14).
    N, C, H, W = 1, 336, 14, 14
    key = jax.random.PRNGKey(0)
    k1, k2 = jax.random.split(key)
    x491 = jax.random.normal(k1, (N, C, H, W), dtype=jnp.float32)
    x495 = jax.random.normal(k2, (N, C, 1, 1), dtype=jnp.float32)

    out = sigmoid_mul(x495, x491)
    jax.block_until_ready(out)

    # Correctness check against plain-JAX reference.
    ref = x491 * jax.nn.sigmoid(x495)
    assert out.shape == x491.shape
    assert jnp.allclose(out, ref, atol=1e-6, rtol=1e-6)
    print("KERNEL_OK")
</pallas_src>

<mosaic_0001>
module attributes {stable_mosaic.version = 11 : i64} {
  func.func @kernel(%arg0: i32, %arg1: memref<112x1xf32, #tpu.memory_space<vmem>>, %arg2: memref<112x196xf32, #tpu.memory_space<vmem>>, %arg3: memref<112x196xf32, #tpu.memory_space<vmem>>) attributes {dimension_semantics = [#tpu.dimension_semantics<parallel>], iteration_bounds = array<i64: 3>, scalar_prefetch = 0 : i64, scratch_operands = 0 : i64, tpu.core_type = #tpu.core_type<tc>, window_params = [{transform_indices = @transform_0, window_bounds = array<i64: 112, 1>}, {transform_indices = @transform_1, window_bounds = array<i64: 112, 196>}, {transform_indices = @transform_2, window_bounds = array<i64: 112, 196>}]} {
    %c0 = arith.constant 0 : index
    %c0_0 = arith.constant 0 : index
    %0 = vector.load %arg1[%c0, %c0_0] : memref<112x1xf32, #tpu.memory_space<vmem>>, vector<112x1xf32>
    %1 = arith.negf %0 : vector<112x1xf32>
    %2 = math.exp %1 : vector<112x1xf32>
    %cst = arith.constant 1.000000e+00 : f32
    %3 = vector.broadcast %cst : f32 to vector<112x1xf32>
    %4 = arith.addf %3, %2 : vector<112x1xf32>
    %5 = arith.divf %3, %4 : vector<112x1xf32>
    %c0_1 = arith.constant 0 : index
    %c0_2 = arith.constant 0 : index
    %6 = vector.load %arg2[%c0_1, %c0_2] : memref<112x196xf32, #tpu.memory_space<vmem>>, vector<112x196xf32>
    %7 = vector.broadcast %5 : vector<112x1xf32> to vector<112x196xf32>
    %8 = arith.mulf %6, %7 : vector<112x196xf32>
    %c0_3 = arith.constant 0 : index
    %c0_4 = arith.constant 0 : index
    %9 = vector.load %arg3[%c0_3, %c0_4] : memref<112x196xf32, #tpu.memory_space<vmem>>, vector<112x196xf32>
    tpu.vector_store %arg3[%c0_3, %c0_4], %8 {strides = array<i32>} : memref<112x196xf32, #tpu.memory_space<vmem>>, vector<112x196xf32>,
    return
  }
  func.func @transform_0(%arg0: i32) -> (i32, i32) {
    %c0_i32 = arith.constant 0 : i32
    %c0_i32_0 = arith.constant 0 : i32
    return %arg0, %c0_i32 : i32, i32
  }
  func.func @transform_1(%arg0: i32) -> (i32, i32) {
    %c0_i32 = arith.constant 0 : i32
    %c0_i32_0 = arith.constant 0 : i32
    return %arg0, %c0_i32 : i32, i32
  }
  func.func @transform_2(%arg0: i32) -> (i32, i32) {
    %c0_i32 = arith.constant 0 : i32
    %c0_i32_0 = arith.constant 0 : i32
    return %arg0, %c0_i32 : i32, i32
  }
}

</mosaic_0001>

<llo_original>
// kernel: tpu_custom_call.1
$region0: #{tpu_custom_call.1}
  #allocation0 [shape = 'u32[]', space=smem, size = 0x4, offset = 0x4, fixed_abs, tag = 'smem constant byte address 0x4 - core index']
  #allocation1 [shape = 'u32[144,128]{1,0:T(1,128)}', space=vmem, size = 0x12000, scoped, tag = 'internal scratch']
  %s0 = inlined_call_operand.vmem [shape: f32[336,1], index: 0, kind: input, shape index: {}]
  %s1 = inlined_call_operand.vmem [shape: f32[336,196], index: 1, kind: input, shape index: {}]
  %s2 = inlined_call_operand.vmem [shape: f32[336,196], index: 2, kind: output, shape index: {}]
  %s3 = sld [smem:[#allocation0]]
  $region41: #{tpu_custom_call.1} parent=0
    _
  %s5 = ssub.s32 1, %s3
  %s6 = scalar_select 0, %s5, %s3
  loop: start=0, step=1, limit=5
  $region2: #{tpu_custom_call.1} parent=0 // loop_pre_header
    _
  $region3: #{tpu_custom_call.1} parent=0 // loop_header
    %s8 = sphi 0, %s12
    %p9 = scmp.ge.s32.totalorder %s8, 5
    %s18 = sphi 0, %s20
    %s21 = sphi 0, %s18
    %s22 = sphi 0, %s21
    %s38 = sphi 0, %s22
    %s44 = sphi 0, %s46
    %s47 = sphi 0, %s44
    %s48 = sphi 0, %s47
    %s64 = sphi 0, %s48
    %s70 = sphi 0, %s72
    %s73 = sphi 0, %s70
    %s74 = sphi 0, %s73
    %s90 = sphi 0, %s74
  $region4: #{tpu_custom_call.1} parent=0 // loop_header_branch
    %11 = sbr.rel (%p9) target = $region8
  $region5: #{tpu_custom_call.1} parent=0 // loop_body
    %s13 = ssub.s32 %s8, 1
    %s14 = ssub.s32 %s8, 2
    %s15 = sadd.s32 %s8, 1
    %s16 = ssub.s32 %s8, %s15
    %p17 = scmp.eq.s32.totalorder %s16, 0
    %s19 = sadd.s32 %s18, 1
    %s20 = scalar_select %p17, %s18, %s19
    %p23 = pneg %p17
    %p24 = scmp.eq.s32.totalorder %s8, 2
    %p25 = por %p23, %p24
    %p26 = scmp.ne.s32.totalorder %s18, %s21
    %p27 = scmp.eq.s32.totalorder %s8, 0
    %p28 = por %p26, %p27
    %p29 = scmp.ne.s32.totalorder %s18, %s21
    %p30 = scmp.eq.s32.totalorder %s13, 2
    %p31 = por %p29, %p30
    %p32 = scmp.ne.s32.totalorder %s21, %s22
    %p33 = scmp.eq.s32.totalorder %s13, 0
    %p34 = por %p32, %p33
    %p35 = scmp.ne.s32.totalorder %s21, %s22
    %p36 = scmp.eq.s32.totalorder %s14, 2
    %p37 = por %p35, %p36
    %p39 = scmp.ne.s32.totalorder %s22, %s38
    %p40 = scmp.eq.s32.totalorder %s14, 0
    %p41 = por %p39, %p40
    %s42 = ssub.s32 %s8, %s15
    %p43 = scmp.eq.s32.totalorder %s42, 0
    %s45 = sadd.s32 %s44, 1
    %s46 = scalar_select %p43, %s44, %s45
    %p49 = pneg %p43
    %p50 = scmp.eq.s32.totalorder %s8, 2
    %p51 = por %p49, %p50
    %p52 = scmp.ne.s32.totalorder %s44, %s47
    %p53 = scmp.eq.s32.totalorder %s8, 0
    %p54 = por %p52, %p53
    %p55 = scmp.ne.s32.totalorder %s44, %s47
    %p56 = scmp.eq.s32.totalorder %s13, 2
    %p57 = por %p55, %p56
    %p58 = scmp.ne.s32.totalorder %s47, %s48
    %p59 = scmp.eq.s32.totalorder %s13, 0
    %p60 = por %p58, %p59
    %p61 = scmp.ne.s32.totalorder %s47, %s48
    %p62 = scmp.eq.s32.totalorder %s14, 2
    %p63 = por %p61, %p62
    %p65 = scmp.ne.s32.totalorder %s48, %s64
    %p66 = scmp.eq.s32.totalorder %s14, 0
    %p67 = por %p65, %p66
    %s68 = ssub.s32 %s8, %s15
    %p69 = scmp.eq.s32.totalorder %s68, 0
    %s71 = sadd.s32 %s70, 1
    %s72 = scalar_select %p69, %s70, %s71
    %p75 = pneg %p69
    %p76 = scmp.eq.s32.totalorder %s8, 2
    %p77 = por %p75, %p76
    %p78 = scmp.ne.s32.totalorder %s70, %s73
    %p79 = scmp.eq.s32.totalorder %s8, 0
    %p80 = por %p78, %p79
    %p81 = scmp.ne.s32.totalorder %s70, %s73
    %p82 = scmp.eq.s32.totalorder %s13, 2
    %p83 = por %p81, %p82
    %p84 = scmp.ne.s32.totalorder %s73, %s74
    %p85 = scmp.eq.s32.totalorder %s13, 0
    %p86 = por %p84, %p85
    %p87 = scmp.ne.s32.totalorder %s73, %s74
    %p88 = scmp.eq.s32.totalorder %s14, 2
    %p89 = por %p87, %p88
    %p91 = scmp.ne.s32.totalorder %s74, %s90
    %p92 = scmp.eq.s32.totalorder %s14, 0
    %p93 = por %p91, %p92
    %p94 = scmp.le.s32.totalorder 1, %s8
    %p95 = scmp.lt.s32.totalorder %s8, 4
    %p96 = pnand %p94, %p95
    %p97 = pneg %p96
    // Predicated region
    $region9: #{tpu_custom_call.1} parent=5 // pred_check
      _
    $region10: #{tpu_custom_call.1} parent=5 // pred_check_branch
      %99 = sbr.rel (%p96) target = $region12
    $region11: #{tpu_custom_call.1} parent=5 // pred_region
      %s100 = ssub.s32 %s8, 1
    $region12: #{tpu_custom_call.1} parent=5 // pred_fallthru
      _
    %p101 = scmp.lt.s32.totalorder %s8, 3
    // Predicated region
    $region13: #{tpu_custom_call.1} parent=5 // pred_check
      %p102 = pneg %p101
    $region14: #{tpu_custom_call.1} parent=5 // pred_check_branch
      %104 = sbr.rel (%p102) target = $region16
    $region15: #{tpu_custom_call.1} parent=5 // pred_region
      // Predicated region
      $region17: #{tpu_custom_call.1} parent=15 // pred_check
        %p105 = pneg %p28
      $region18: #{tpu_custom_call.1} parent=15 // pred_check_branch
        %107 = sbr.rel (%p105) target = $region20
      $region19: #{tpu_custom_call.1} parent=15 // pred_region
        %s108 = smul.u32 14, %s8
        %p109 = scmp.lt.s32.totalorder %s108, 41
        %s110 = scalar_select %p109, %s108, 41
        %s111 = smul.addr %s110, 8
        %s112 = scalar_lea.vmem %s0, %s111
        %s113 = smul.u32 14, %s8
      $region20: #{tpu_custom_call.1} parent=15 // pred_fallthru
        _
      // Predicated region
      $region21: #{tpu_custom_call.1} parent=15 // pred_check
        %p114 = pneg %p54
      $region22: #{tpu_custom_call.1} parent=15 // pred_check_branch
        %116 = sbr.rel (%p114) target = $region24
      $region23: #{tpu_custom_call.1} parent=15 // pred_region
        %s117 = smul.u32 14, %s8
        %p118 = scmp.lt.s32.totalorder %s117, 41
        %s119 = scalar_select %p118, %s117, 41
        %s120 = smul.addr %s119, 2
        %s121 = smul.addr %s120, 8
        %s122 = scalar_lea.vmem %s1, %s121
        %s123 = smul.u32 14, %s8
      $region24: #{tpu_custom_call.1} parent=15 // pred_fallthru
        _
    $region16: #{tpu_custom_call.1} parent=5 // pred_fallthru
      _
    %p124 = scmp.le.s32.totalorder 1, %s8
    %p125 = scmp.lt.s32.totalorder %s8, 4
    %p126 = pnand %p124, %p125
    %p127 = pneg %p126
    // Predicated region
    $region25: #{tpu_custom_call.1} parent=5 // pred_check
      _
    $region26: #{tpu_custom_call.1} parent=5 // pred_check_branch
      %129 = sbr.rel (%p126) target = $region28
    $region27: #{tpu_custom_call.1} parent=5 // pred_region
      %s130 = ssub.s32 %s8, 1
      %s131 = smul.u32 14, %s13
      %p132 = scmp.lt.s32.totalorder %s131, 41
      %s133 = scalar_select %p132, %s131, 41
      %s134 = smul.addr %s133, 8
      %s135 = scalar_lea.vmem %s0, %s134
      %p136 = pneg %p34
      %p137 = pneg %p31
      %s138 = smul.u32 14, %s13
      %p139 = scmp.lt.s32.totalorder %s138, 41
      %s140 = scalar_select %p139, %s138, 41
      %s141 = smul.addr %s140, 2
      %s142 = smul.addr %s141, 8
      %s143 = scalar_lea.vmem %s1, %s142
      %p144 = pneg %p60
      %p145 = pneg %p57
      %p146 = pneg %p86
      %p147 = pneg %p83
      %s148 = smul.u32 14, %s13
      %p149 = scmp.lt.s32.totalorder %s148, 41
      %s150 = scalar_select %p149, %s148, 41
      %s151 = smul.addr %s150, 2
      %s152 = smul.addr %s151, 8
      %s153 = scalar_lea.vmem %s2, %s152
      %s154 = smul.u32 14, %s13
      %p155 = scmp.lt.s32.totalorder %s154, 41
      %s156 = scalar_select %p155, %s154, 41
      %s157 = smul.addr %s156, 8
      %s158 = scalar_lea.vmem %s0, %s157
      %s159 = smul.u32 14, %s13
      %s160 = smul.u32 14, %s13
      %p161 = scmp.lt.s32.totalorder %s160, 41
      %s162 = scalar_select %p161, %s160, 41
      %s163 = smul.addr %s162, 2
      %s164 = smul.addr %s163, 8
      %s165 = scalar_lea.vmem %s1, %s164
      %s166 = smul.u32 14, %s13
      %s167 = smul.u32 14, %s13
      %p168 = scmp.lt.s32.totalorder %s167, 41
      %s169 = scalar_select %p168, %s167, 41
      %s170 = smul.addr %s169, 2
      %s171 = smul.addr %s170, 8
      %s172 = scalar_lea.vmem %s2, %s171
      %s173 = smul.u32 14, %s13
      %v174 = vld [vmem:[%s158] sm:$0xff]
      %v175 = vld [vmem:[%s158 + $0x8] sm:$0xff]
      %v176 = vld [vmem:[%s158 + $0x10] sm:$0xff]
      %v177 = vld [vmem:[%s158 + $0x18] sm:$0xff]
      %v178 = vld [vmem:[%s158 + $0x20] sm:$0xff]
      %v179 = vld [vmem:[%s158 + $0x28] sm:$0xff]
      %v180 = vld [vmem:[%s158 + $0x30] sm:$0xff]
      %v181 = vld [vmem:[%s158 + $0x38] sm:$0xff]
      %v182 = vld [vmem:[%s158 + $0x40] sm:$0xff]
      %v183 = vld [vmem:[%s158 + $0x48] sm:$0xff]
      %v184 = vld [vmem:[%s158 + $0x50] sm:$0xff]
      %v185 = vld [vmem:[%s158 + $0x58] sm:$0xff]
      %v186 = vld [vmem:[%s158 + $0x60] sm:$0xff]
      %v187 = vld [vmem:[%s158 + $0x68] sm:$0xff]
      %v188 = vxor.u32 %v174, 2147483648
      %v189 = vxor.u32 %v175, 2147483648
      %v190 = vxor.u32 %v176, 2147483648
      %v191 = vxor.u32 %v177, 2147483648
      %v192 = vxor.u32 %v178, 2147483648
      %v193 = vxor.u32 %v179, 2147483648
      %v194 = vxor.u32 %v180, 2147483648
      %v195 = vxor.u32 %v181, 2147483648
      %v196 = vxor.u32 %v182, 2147483648
      %v197 = vxor.u32 %v183, 2147483648
      %v198 = vxor.u32 %v184, 2147483648
      %v199 = vxor.u32 %v185, 2147483648
      %v200 = vxor.u32 %v186, 2147483648
      %v201 = vxor.u32 %v187, 2147483648
      %v202 = vmul.f32 %v188, 1.442695
      %v203 = vpow.pop %v202
      %v204 = vmul.f32 %v189, 1.442695
      %v205 = vpow.pop %v204
      %v206 = vmul.f32 %v190, 1.442695
      %v207 = vpow.pop %v206
      %v208 = vmul.f32 %v191, 1.442695
      %v209 = vpow.pop %v208
      %v210 = vmul.f32 %v192, 1.442695
      %v211 = vpow.pop %v210
      %v212 = vmul.f32 %v193, 1.442695
      %v213 = vpow.pop %v212
      %v214 = vmul.f32 %v194, 1.442695
      %v215 = vpow.pop %v214
      %v216 = vmul.f32 %v195, 1.442695
      %v217 = vpow.pop %v216
      %v218 = vmul.f32 %v196, 1.442695
      %v219 = vpow.pop %v218
      %v220 = vmul.f32 %v197, 1.442695
      %v221 = vpow.pop %v220
      %v222 = vmul.f32 %v198, 1.442695
      %v223 = vpow.pop %v222
      %v224 = vmul.f32 %v199, 1.442695
      %v225 = vpow.pop %v224
      %v226 = vmul.f32 %v200, 1.442695
      %v227 = vpow.pop %v226
      %v228 = vmul.f32 %v201, 1.442695
      %v229 = vpow.pop %v228
      %v230 = vadd.f32 %v203, 1.0
      %v231 = vadd.f32 %v205, 1.0
      %v232 = vadd.f32 %v207, 1.0
      %v233 = vadd.f32 %v209, 1.0
      %v234 = vadd.f32 %v211, 1.0
      %v235 = vadd.f32 %v213, 1.0
      %v236 = vadd.f32 %v215, 1.0
      %v237 = vadd.f32 %v217, 1.0
      %v238 = vadd.f32 %v219, 1.0
      %v239 = vadd.f32 %v221, 1.0
      %v240 = vadd.f32 %v223, 1.0
      %v241 = vadd.f32 %v225, 1.0
      %v242 = vadd.f32 %v227, 1.0
      %v243 = vadd.f32 %v229, 1.0
      %v244 = vrcp.pop %v230
      %v245 = vmul.f32 1.0, %v244
      %v246 = vrcp.pop %v231
      %v247 = vmul.f32 1.0, %v246
      %v248 = vrcp.pop %v232
      %v249 = vmul.f32 1.0, %v248
      %v250 = vrcp.pop %v233
      %v251 = vmul.f32 1.0, %v250
      %v252 = vrcp.pop %v234
      %v253 = vmul.f32 1.0, %v252
      %v254 = vrcp.pop %v235
      %v255 = vmul.f32 1.0, %v254
      %v256 = vrcp.pop %v236
      %v257 = vmul.f32 1.0, %v256
      %v258 = vrcp.pop %v237
      %v259 = vmul.f32 1.0, %v258
      %v260 = vrcp.pop %v238
      %v261 = vmul.f32 1.0, %v260
      %v262 = vrcp.pop %v239
      %v263 = vmul.f32 1.0, %v262
      %v264 = vrcp.pop %v240
      %v265 = vmul.f32 1.0, %v264
      %v266 = vrcp.pop %v241
      %v267 = vmul.f32 1.0, %v266
      %v268 = vrcp.pop %v242
      %v269 = vmul.f32 1.0, %v268
      %v270 = vrcp.pop %v243
      %v271 = vmul.f32 1.0, %v270
      %v272 = vld [vmem:[%s165] sm:$0xff]
      %v273 = vld [vmem:[%s165 + $0x8] sm:$0xff]
      %v274 = vld [vmem:[%s165 + $0x10] sm:$0xff]
      %v275 = vld [vmem:[%s165 + $0x18] sm:$0xff]
      %v276 = vld [vmem:[%s165 + $0x20] sm:$0xff]
      %v277 = vld [vmem:[%s165 + $0x28] sm:$0xff]
      %v278 = vld [vmem:[%s165 + $0x30] sm:$0xff]
      %v279 = vld [vmem:[%s165 + $0x38] sm:$0xff]
      %v280 = vld [vmem:[%s165 + $0x40] sm:$0xff]
      %v281 = vld [vmem:[%s165 + $0x48] sm:$0xff]
      %v282 = vld [vmem:[%s165 + $0x50] sm:$0xff]
      %v283 = vld [vmem:[%s165 + $0x58] sm:$0xff]
      %v284 = vld [vmem:[%s165 + $0x60] sm:$0xff]
      %v285 = vld [vmem:[%s165 + $0x68] sm:$0xff]
      %v286 = vld [vmem:[%s165 + $0x70] sm:$0xff]
      %v287 = vld [vmem:[%s165 + $0x78] sm:$0xff]
      %v288 = vld [vmem:[%s165 + $0x80] sm:$0xff]
      %v289 = vld [vmem:[%s165 + $0x88] sm:$0xff]
      %v290 = vld [vmem:[%s165 + $0x90] sm:$0xff]
      %v291 = vld [vmem:[%s165 + $0x98] sm:$0xff]
      %v292 = vld [vmem:[%s165 + $0xa0] sm:$0xff]
      %v293 = vld [vmem:[%s165 + $0xa8] sm:$0xff]
      %v294 = vld [vmem:[%s165 + $0xb0] sm:$0xff]
      %v295 = vld [vmem:[%s165 + $0xb8] sm:$0xff]
      %v296 = vld [vmem:[%s165 + $0xc0] sm:$0xff]
      %v297 = vld [vmem:[%s165 + $0xc8] sm:$0xff]
      %v298 = vld [vmem:[%s165 + $0xd0] sm:$0xff]
      %v299 = vld [vmem:[%s165 + $0xd8] sm:$0xff]
      %301 = vset.pattern.permute.xlu0 0
      %302 = vperm.xlu0 %301, %v245
      %v303 = vpop.permute.xlu0 %302
      %306 = vset.pattern.permute.xlu0 0
      %307 = vperm.xlu0 %306, %v247
      %v308 = vpop.permute.xlu0 %307
      %311 = vset.pattern.permute.xlu0 0
      %312 = vperm.xlu0 %311, %v249
      %v313 = vpop.permute.xlu0 %312
      %316 = vset.pattern.permute.xlu0 0
      %317 = vperm.xlu0 %316, %v251
      %v318 = vpop.permute.xlu0 %317
      %321 = vset.pattern.permute.xlu0 0
      %322 = vperm.xlu0 %321, %v253
      %v323 = vpop.permute.xlu0 %322
      %326 = vset.pattern.permute.xlu0 0
      %327 = vperm.xlu0 %326, %v255
      %v328 = vpop.permute.xlu0 %327
      %331 = vset.pattern.permute.xlu0 0
      %332 = vperm.xlu0 %331, %v257
      %v333 = vpop.permute.xlu0 %332
      %336 = vset.pattern.permute.xlu0 0
      %337 = vperm.xlu0 %336, %v259
      %v338 = vpop.permute.xlu0 %337
      %341 = vset.pattern.permute.xlu0 0
      %342 = vperm.xlu0 %341, %v261
      %v343 = vpop.permute.xlu0 %342
      %346 = vset.pattern.permute.xlu0 0
      %347 = vperm.xlu0 %346, %v263
      %v348 = vpop.permute.xlu0 %347
      %351 = vset.pattern.permute.xlu0 0
      %352 = vperm.xlu0 %351, %v265
      %v353 = vpop.permute.xlu0 %352
      %356 = vset.pattern.permute.xlu0 0
      %357 = vperm.xlu0 %356, %v267
      %v358 = vpop.permute.xlu0 %357
      %361 = vset.pattern.permute.xlu0 0
      %362 = vperm.xlu0 %361, %v269
      %v363 = vpop.permute.xlu0 %362
      %366 = vset.pattern.permute.xlu0 0
      %367 = vperm.xlu0 %366, %v271
      %v368 = vpop.permute.xlu0 %367
      %v370 = vmul.f32 %v272, %v303
      %v371 = vmul.f32 %v273, %v303
      %v372 = vmul.f32 %v274, %v308
      %v373 = vmul.f32 %v275, %v308
      %v374 = vmul.f32 %v276, %v313
      %v375 = vmul.f32 %v277, %v313
      %v376 = vmul.f32 %v278, %v318
      %v377 = vmul.f32 %v279, %v318
      %v378 = vmul.f32 %v280, %v323
      %v379 = vmul.f32 %v281, %v323
      %v380 = vmul.f32 %v282, %v328
      %v381 = vmul.f32 %v283, %v328
      %v382 = vmul.f32 %v284, %v333
      %v383 = vmul.f32 %v285, %v333
      %v384 = vmul.f32 %v286, %v338
      %v385 = vmul.f32 %v287, %v338
      %v386 = vmul.f32 %v288, %v343
      %v387 = vmul.f32 %v289, %v343
      %v388 = vmul.f32 %v290, %v348
      %v389 = vmul.f32 %v291, %v348
      %v390 = vmul.f32 %v292, %v353
      %v391 = vmul.f32 %v293, %v353
      %v392 = vmul.f32 %v294, %v358
      %v393 = vmul.f32 %v295, %v358
      %v394 = vmul.f32 %v296, %v363
      %v395 = vmul.f32 %v297, %v363
      %v396 = vmul.f32 %v298, %v368
      %v397 = vmul.f32 %v299, %v368
      %398 = vst [vmem:[%s172] sm:$0xff] %v370
      %vm399 = vcmask 556032
      %400 = vst.msk [vmem:[%s172 + $0x8] sm:$0xff] %vm399, %v371
      %401 = vst [vmem:[%s172 + $0x10] sm:$0xff] %v372
      %402 = vst.msk [vmem:[%s172 + $0x18] sm:$0xff] %vm399, %v373
      %403 = vst [vmem:[%s172 + $0x20] sm:$0xff] %v374
      %404 = vst.msk [vmem:[%s172 + $0x28] sm:$0xff] %vm399, %v375
      %405 = vst [vmem:[%s172 + $0x30] sm:$0xff] %v376
      %406 = vst.msk [vmem:[%s172 + $0x38] sm:$0xff] %vm399, %v377
      %407 = vst [vmem:[%s172 + $0x40] sm:$0xff] %v378
      %408 = vst.msk [vmem:[%s172 + $0x48] sm:$0xff] %vm399, %v379
      %409 = vst [vmem:[%s172 + $0x50] sm:$0xff] %v380
      %410 = vst.msk [vmem:[%s172 + $0x58] sm:$0xff] %vm399, %v381
      %411 = vst [vmem:[%s172 + $0x60] sm:$0xff] %v382
      %412 = vst.msk [vmem:[%s172 + $0x68] sm:$0xff] %vm399, %v383
      %413 = vst [vmem:[%s172 + $0x70] sm:$0xff] %v384
      %414 = vst.msk [vmem:[%s172 + $0x78] sm:$0xff] %vm399, %v385
      %415 = vst [vmem:[%s172 + $0x80] sm:$0xff] %v386
      %416 = vst.msk [vmem:[%s172 + $0x88] sm:$0xff] %vm399, %v387
      %417 = vst [vmem:[%s172 + $0x90] sm:$0xff] %v388
      %418 = vst.msk [vmem:[%s172 + $0x98] sm:$0xff] %vm399, %v389
      %419 = vst [vmem:[%s172 + $0xa0] sm:$0xff] %v390
      %420 = vst.msk [vmem:[%s172 + $0xa8] sm:$0xff] %vm399, %v391
      %421 = vst [vmem:[%s172 + $0xb0] sm:$0xff] %v392
      %422 = vst.msk [vmem:[%s172 + $0xb8] sm:$0xff] %vm399, %v393
      %423 = vst [vmem:[%s172 + $0xc0] sm:$0xff] %v394
      %424 = vst.msk [vmem:[%s172 + $0xc8] sm:$0xff] %vm399, %v395
      %425 = vst [vmem:[%s172 + $0xd0] sm:$0xff] %v396
      %426 = vst.msk [vmem:[%s172 + $0xd8] sm:$0xff] %vm399, %v397
      %s427 = smul.u32 14, %s13
      %p428 = scmp.lt.s32.totalorder %s427, 41
      %s429 = scalar_select %p428, %s427, 41
      %s430 = smul.addr %s429, 2
      %s431 = smul.addr %s430, 8
      %s432 = scalar_lea.vmem %s2, %s431
      // Predicated region
      $region29: #{tpu_custom_call.1} parent=27 // pred_check
        %p433 = pneg %p83
      $region30: #{tpu_custom_call.1} parent=27 // pred_check_branch
        %435 = sbr.rel (%p433) target = $region32
      $region31: #{tpu_custom_call.1} parent=27 // pred_region
        %s436 = smul.u32 14, %s13
      $region32: #{tpu_custom_call.1} parent=27 // pred_fallthru
        _
    $region28: #{tpu_custom_call.1} parent=5 // pred_fallthru
      _
    %p437 = scmp.le.s32.totalorder 2, %s8
    // Predicated region
    $region33: #{tpu_custom_call.1} parent=5 // pred_check
      %p438 = pneg %p437
    $region34: #{tpu_custom_call.1} parent=5 // pred_check_branch
      %440 = sbr.rel (%p438) target = $region36
    $region35: #{tpu_custom_call.1} parent=5 // pred_region
      %s441 = ssub.s32 %s8, 2
      // Predicated region
      $region37: #{tpu_custom_call.1} parent=35 // pred_check
        %p442 = pneg %p89
      $region38: #{tpu_custom_call.1} parent=35 // pred_check_branch
        %444 = sbr.rel (%p442) target = $region40
      $region39: #{tpu_custom_call.1} parent=35 // pred_region
        %s445 = smul.u32 14, %s14
        %p446 = scmp.lt.s32.totalorder %s445, 41
        %s447 = scalar_select %p446, %s445, 41
        %s448 = smul.addr %s447, 2
        %s449 = smul.addr %s448, 8
        %s450 = scalar_lea.vmem %s2, %s449
      $region40: #{tpu_custom_call.1} parent=35 // pred_fallthru
        _
    $region36: #{tpu_custom_call.1} parent=5 // pred_fallthru
      _
  $region6: #{tpu_custom_call.1} parent=0 // loop_footer
    %s12 = sadd.s32 1, %s8
  $region7: #{tpu_custom_call.1} parent=0 // loop_footer_branch
    %7 = sbr.rel target = $region3
  $region8: #{tpu_custom_call.1} parent=0 // loop_exit
    _

</llo_original>
